<compile_context>
chip_gen: v7x
topology: tpu7x:2x2x1
jax: 0.10.0
libtpu: 0.0.40
codegen_flags: <defaults>
</compile_context>

<pallas_src>
import math

import jax
import jax.numpy as jnp
from jax.experimental import pallas as pl
from jax.experimental.pallas import tpu as pltpu


def _drop_path_kernel(m_ref, x_ref, o_ref):
    """m_ref: (B, 1, 1) scaled keep mask (values in {0, 1/keep_prob}), same
    dtype as x; x_ref / o_ref: (B, TILE_R, 128) feature slab."""
    o_ref[...] = x_ref[...] * m_ref[...]


def drop_path(x: jax.Array, drop_prob: float = 0.1, training: bool = False,
              *, seed: int = 0) -> jax.Array:
    """Pallas implementation of stochastic depth. Matches PyTorch drop_path."""
    if drop_prob == 0.0 or not training:
        return x

    keep_prob = 1.0 - drop_prob
    B = x.shape[0]
    N = int(math.prod(x.shape[1:]))

    # Per-sample keep mask, computed once (tile-invariant across the grid),
    # with the 1/keep_prob scale folded in -> kernel does one multiply/elem.
    # TODO(synk): thread a jax.random key from the caller instead of an int
    # seed if distinct masks per forward pass are required.
    key = jax.random.PRNGKey(seed)
    u = jax.random.uniform(key, (B,), dtype=jnp.float32)
    mask_scaled = jnp.floor(keep_prob + u) * (1.0 / keep_prob)
    mask_scaled = mask_scaled.astype(x.dtype).reshape(B, 1, 1)

    # Lane-dense layout: per-sample features on a (rows, 128) plane so every
    # load/store is full vreg width on all chip generations.
    LANES = 128
    itemsize = jnp.dtype(x.dtype).itemsize
    sub = 8 * max(1, 4 // itemsize)            # 8 for f32, 16 for bf16, ...
    rows_needed = pl.cdiv(N, LANES)

    # ~2 MiB per (B, TILE_R, 128) block: big enough for ~roofline HBM BW,
    # small enough that the double-buffered in+out pipeline stays well inside
    # the default scoped-VMEM limit on v5e / v6e / v7x.
    target_rows = max(sub, (2 * 1024 * 1024) // (B * LANES * itemsize))
    tile_r = min(rows_needed, target_rows)
    tile_r = max(sub, (tile_r // sub) * sub)
    rows = ((rows_needed + tile_r - 1) // tile_r) * tile_r
    n_pad = rows * LANES

    x_flat = x.reshape(B, N)
    if n_pad != N:
        x_flat = jnp.pad(x_flat, ((0, 0), (0, n_pad - N)))
    x3d = x_flat.reshape(B, rows, LANES)

    grid = (rows // tile_r,)
    out3d = pl.pallas_call(
        _drop_path_kernel,
        out_shape=jax.ShapeDtypeStruct((B, rows, LANES), x.dtype),
        grid=grid,
        in_specs=[
            pl.BlockSpec((B, 1, 1), lambda j: (0, 0, 0)),           # mask
            pl.BlockSpec((B, tile_r, LANES), lambda j: (0, j, 0)),  # x slab
        ],
        out_specs=pl.BlockSpec((B, tile_r, LANES), lambda j: (0, j, 0)),
        compiler_params=pltpu.CompilerParams(
            dimension_semantics=("parallel",)),
    )(mask_scaled, x3d)

    out = out3d.reshape(B, n_pad)[:, :N].reshape(x.shape)
    return out


class DropPath:
    """Mirror of the PyTorch nn.Module (drop_prob only; no learned params)."""

    def __init__(self, drop_prob: float = 0.1):
        self.drop_prob = drop_prob
        self.training = True

    def __call__(self, x: jax.Array, seed: int = 0) -> jax.Array:
        return drop_path(x, self.drop_prob, self.training, seed=seed)


if __name__ == "__main__":
    key = jax.random.PRNGKey(0)
    # Small NCHW input consistent with a SAM-style feature map.
    x = jax.random.normal(key, (2, 4, 16, 16), dtype=jnp.float32)

    module = DropPath(drop_prob=0.1)

    # Training path: per-sample mask, scaled by 1/keep_prob.
    y_train = jax.block_until_ready(module(x, seed=1234))
    assert y_train.shape == x.shape and y_train.dtype == x.dtype

    # Sanity: each sample is either all zeros or exactly x / keep_prob.
    keep_prob = 1.0 - module.drop_prob
    for b in range(x.shape[0]):
        yb = y_train[b]
        is_zero = bool(jnp.all(yb == 0.0))
        is_scaled = bool(jnp.allclose(yb, x[b] / keep_prob, rtol=1e-6, atol=1e-6))
        assert is_zero or is_scaled, f"sample {b}: invalid drop_path output"

    # Eval path: identity.
    module.training = False
    y_eval = jax.block_until_ready(module(x))
    assert bool(jnp.array_equal(y_eval, x))

    print("KERNEL_OK")
</pallas_src>

<mosaic_0001>
module attributes {stable_mosaic.version = 11 : i64} {
  func.func @_drop_path_kernel(%arg0: i32, %arg1: memref<2x1x1xf32, #tpu.memory_space<vmem>>, %arg2: memref<2x8x128xf32, #tpu.memory_space<vmem>>, %arg3: memref<2x8x128xf32, #tpu.memory_space<vmem>>) attributes {dimension_semantics = [#tpu.dimension_semantics<parallel>], iteration_bounds = array<i64: 1>, scalar_prefetch = 0 : i64, scratch_operands = 0 : i64, tpu.core_type = #tpu.core_type<tc>, window_params = [{pipeline_mode = #tpu.pipeline_mode<synchronous>, transform_indices = @transform_0, window_bounds = array<i64: 2, 1, 1>}, {transform_indices = @transform_1, window_bounds = array<i64: 2, 8, 128>}, {transform_indices = @transform_2, window_bounds = array<i64: 2, 8, 128>}]} {
    %c0 = arith.constant 0 : index
    %c0_0 = arith.constant 0 : index
    %c0_1 = arith.constant 0 : index
    %0 = vector.load %arg2[%c0, %c0_0, %c0_1] : memref<2x8x128xf32, #tpu.memory_space<vmem>>, vector<2x8x128xf32>
    %c0_2 = arith.constant 0 : index
    %c0_3 = arith.constant 0 : index
    %c0_4 = arith.constant 0 : index
    %1 = vector.load %arg1[%c0_2, %c0_3, %c0_4] : memref<2x1x1xf32, #tpu.memory_space<vmem>>, vector<2x1x1xf32>
    %2 = vector.broadcast %1 : vector<2x1x1xf32> to vector<2x8x128xf32>
    %3 = arith.mulf %0, %2 : vector<2x8x128xf32>
    %c0_5 = arith.constant 0 : index
    %c0_6 = arith.constant 0 : index
    %c0_7 = arith.constant 0 : index
    %4 = vector.load %arg3[%c0_5, %c0_6, %c0_7] : memref<2x8x128xf32, #tpu.memory_space<vmem>>, vector<2x8x128xf32>
    tpu.vector_store %arg3[%c0_5, %c0_6, %c0_7], %3 {strides = array<i32>} : memref<2x8x128xf32, #tpu.memory_space<vmem>>, vector<2x8x128xf32>,
    return
  }
  func.func @transform_0(%arg0: i32) -> (i32, i32, i32) {
    %c0_i32 = arith.constant 0 : i32
    %c0_i32_0 = arith.constant 0 : i32
    %c0_i32_1 = arith.constant 0 : i32
    %c0_i32_2 = arith.constant 0 : i32
    return %c0_i32, %c0_i32_0, %c0_i32_1 : i32, i32, i32
  }
  func.func @transform_1(%arg0: i32) -> (i32, i32, i32) {
    %c0_i32 = arith.constant 0 : i32
    %c0_i32_0 = arith.constant 0 : i32
    %c0_i32_1 = arith.constant 0 : i32
    return %c0_i32, %arg0, %c0_i32_0 : i32, i32, i32
  }
  func.func @transform_2(%arg0: i32) -> (i32, i32, i32) {
    %c0_i32 = arith.constant 0 : i32
    %c0_i32_0 = arith.constant 0 : i32
    %c0_i32_1 = arith.constant 0 : i32
    return %c0_i32, %arg0, %c0_i32_0 : i32, i32, i32
  }
}

</mosaic_0001>

<llo_original>
// kernel: tpu_custom_call.1
$region0: #{tpu_custom_call.1}
  #allocation0 [shape = 'u32[]', space=smem, size = 0x4, offset = 0x4, fixed_abs, tag = 'smem constant byte address 0x4 - core index']
  #allocation1 [shape = 'u32[144,128]{1,0:T(1,128)}', space=vmem, size = 0x12000, scoped, tag = 'internal scratch']
  %s0 = inlined_call_operand.vmem [shape: f32[2,1,1], index: 0, kind: input, shape index: {}]
  %s1 = inlined_call_operand.hbm [shape: f32[2,8,128], index: 1, kind: input, shape index: {}]
  %s2 = inlined_call_operand.hbm [shape: f32[2,8,128], index: 2, kind: output, shape index: {}]
  %s3 = sld [smem:[#allocation0]]
  $region22: #{tpu_custom_call.1} parent=0
    _
  %s5 = ssub.s32 1, %s3
  %s6 = scalar_select 0, %s5, %s3
  $region1: #{tpu_custom_call.1} parent=0
    #allocation2 [shape = 'u8[8192]{0}', space=vmem, size = 0x2000, scoped, tag = 'input window, operand 1, single buffered']
    #allocation3 [shape = 's32[1]{0}', space=sflag, size = 0x4, scoped, tag = 'scoped memory for tpu_custom_call.1']
    #allocation4 [shape = 's32[1]{0}', space=sflag, size = 0x4, scoped, tag = 'scoped memory for tpu_custom_call.1']
    #allocation5 [shape = 'u8[8192]{0}', space=vmem, size = 0x2000, scoped, tag = 'output window, operand 0, single buffered']
    %7 = vsyncpa [#allocation3], 0
    %8 = vsyncpa [#allocation4], 0
    // Predicated region
    $region2: #{tpu_custom_call.1} parent=1 // pred_check
      _
    $region3: #{tpu_custom_call.1} parent=1 // pred_check_branch
      %10 = sbr.rel (0) target = $region5
    $region4: #{tpu_custom_call.1} parent=1 // pred_region
      _
    $region5: #{tpu_custom_call.1} parent=1 // pred_fallthru
      _
    // Predicated region
    $region6: #{tpu_custom_call.1} parent=1 // pred_check
      _
    $region7: #{tpu_custom_call.1} parent=1 // pred_check_branch
      %12 = sbr.rel (0) target = $region9
    $region8: #{tpu_custom_call.1} parent=1 // pred_region
      %s14 = ssub.s32 256, 256
      %15 = vsyncadd [#allocation3], %s14
      %s16 = sshll.u32 [#allocation2], 4
      %s17 = int_to_ptr.vmem [resolvable:$true] %s16
      %22 = dma.hbm_to_vmem [thread:$0]  %s1, 256, %s17, [#allocation3], 128, 128, 8
    $region9: #{tpu_custom_call.1} parent=1 // pred_fallthru
      _
    // Predicated region
    $region10: #{tpu_custom_call.1} parent=1 // pred_check
      _
    $region11: #{tpu_custom_call.1} parent=1 // pred_check_branch
      %24 = sbr.rel (0) target = $region13
    $region12: #{tpu_custom_call.1} parent=1 // pred_region
      %25 = dma.done [#allocation3], 256
    $region13: #{tpu_custom_call.1} parent=1 // pred_fallthru
      _
    %v26 = vld [vmem:[#allocation2] sm:$0xff]
    %v27 = vld [vmem:[#allocation2 + $0x8] sm:$0xff]
    %v28 = vld [vmem:[%s0] sm:$0x1]
    %v29 = vld [vmem:[%s0 + $0x1] sm:$0x1]
    %v32 = vlaneseq
    %v33 = vshrl.u32 %v32, 7
    %v34 = vsub.s32 0, %v33
    %v35 = vrot.slane %v28, %v34
    %v36 = vlaneseq
    %v37 = vshrl.u32 %v36, 7
    %v38 = vsub.s32 0, %v37
    %v39 = vrot.slane %v29, %v38
    %40 = vset.pattern.permute.xlu0 0
    %41 = vperm.xlu0 %40, %v35
    %v42 = vpop.permute.xlu0 %41
    %44 = vset.pattern.permute.xlu0 0
    %45 = vperm.xlu0 %44, %v39
    %v46 = vpop.permute.xlu0 %45
    %v48 = vmul.f32 %v26, %v42
    %v49 = vmul.f32 %v27, %v46
    %50 = vst [vmem:[#allocation5] sm:$0xff] %v48
    %51 = vst [vmem:[#allocation5 + $0x8] sm:$0xff] %v49
    // Predicated region
    $region14: #{tpu_custom_call.1} parent=1 // pred_check
      _
    $region15: #{tpu_custom_call.1} parent=1 // pred_check_branch
      %53 = sbr.rel (0) target = $region17
    $region16: #{tpu_custom_call.1} parent=1 // pred_region
      %s55 = ssub.s32 256, 256
      %56 = vsyncadd [#allocation4], %s55
      %s57 = sshll.u32 [#allocation5], 4
      %s58 = int_to_ptr.vmem [resolvable:$true] %s57
      %63 = dma.vmem_to_hbm [thread:$0]  %s58, 256, %s2, [#allocation4], 128, 128, 8
    $region17: #{tpu_custom_call.1} parent=1 // pred_fallthru
      _
    // Predicated region
    $region18: #{tpu_custom_call.1} parent=1 // pred_check
      _
    $region19: #{tpu_custom_call.1} parent=1 // pred_check_branch
      %65 = sbr.rel (0) target = $region21
    $region20: #{tpu_custom_call.1} parent=1 // pred_region
      %66 = dma.done [#allocation4], 256
    $region21: #{tpu_custom_call.1} parent=1 // pred_fallthru
      _
    %67 = vsyncpa [#allocation3], 1
    %68 = vsyncpa [#allocation4], 1

</llo_original>
